<compile_context>
chip_gen: v7x
topology: tpu7x:2x2x1
jax: 0.10.0
libtpu: 0.0.40
codegen_flags: <defaults>
</compile_context>

<pallas_src>
import functools

import jax
import jax.numpy as jnp
from jax import lax
from jax.experimental import pallas as pl
from jax.experimental.pallas import tpu as pltpu

EMB = 126        # logical embedding width (matches nh_factor_mtrx / shrink_layer2)
EMB_PAD = 128    # lane-dense padded width used inside the kernel
HID_PAD = 128    # MLP hidden dim zero-padded 64 -> 128 (full-lane intermediates)
CHEM_FEAT = 8    # pooled chemception feature width (stand-in)


# ----------------------------------------------------------------------------
# Fused Pallas kernel: sub-model tails + fusion epilogue, single output slab
# ----------------------------------------------------------------------------
def _fused_fusion_kernel(mode,
                         factor_ref,            # (1,1) f32 scalar in SMEM
                         hchem_ref,             # (tb, CHEM_FEAT)
                         y_ref,                 # (tb, desc_dim)
                         wc_ref, bc_ref,        # chem proj  (CHEM_FEAT,128),(1,128)
                         w1_ref, b1_ref,        # mlp l1     (desc,128),(1,128)
                         w2_ref, b2_ref,        # mlp l2     (128,128),(1,128)
                         ws_ref, bs_ref,        # shrink     (256,128),(1,128)
                         out_ref):              # (tb, 256) or (tb, 384) slab
    # --- sub-model tails: lane-dense (tb, 128) embeddings (lanes 126..127 == 0) ---
    chem = jnp.dot(hchem_ref[...], wc_ref[...],
                   preferred_element_type=jnp.float32) + bc_ref[...]
    h = jnp.maximum(
        jnp.dot(y_ref[...], w1_ref[...], preferred_element_type=jnp.float32)
        + b1_ref[...], 0.0)
    decpt = jnp.dot(h, w2_ref[...], preferred_element_type=jnp.float32) + b2_ref[...]

    # (tb, 256) lane-aligned concat — also the LHS of the K=256 shrink dot.
    emb2 = jnp.concatenate([chem, decpt], axis=-1)
    out_ref[:, :2 * EMB_PAD] = emb2

    # --- fusion epilogue (mode is a static Python string: resolved at trace time) ---
    if mode == "shrink":
        # relu(concat(chem, decpt) @ W + b) as one K=256 MXU push.
        comb = jnp.dot(emb2, ws_ref[...], preferred_element_type=jnp.float32)
        out_ref[:, 2 * EMB_PAD:] = jnp.maximum(comb + bs_ref[...], 0.0)
    elif mode == "blend":          # no_harm / no_harm_matrix(126-wide) / avg
        a = factor_ref[0, 0]
        out_ref[:, 2 * EMB_PAD:] = (1.0 - a) * chem + a * decpt
    # mode == "embed": combined is built (or aliased) in the XLA wrapper;
    # no redundant third store.


def _pick_tile_b(B, tile_b):
    """Batch tile: as large as possible (amortizes ~0.35us/step pipeline cost),
    but guarantee >=2 grid steps when B >= 16 so v7x megacore can shard the
    batch axis over both TensorCores.  Always a multiple of 8 when grid > 1."""
    if B <= 8:
        return B                      # single full-extent block (no (8,·) constraint)
    half = -(-B // 2)                 # cdiv(B, 2)
    tb = -(-half // 8) * 8            # round up to a multiple of 8
    return min(tb, tile_b)


def fused_fusion_forward(mode, factor, h_chem, y, params, *, tile_b=2048):
    """Run the fused kernel.  Returns one padded (B, 256|384) slab:
    [chem_pad | decpt_pad | (combined_pad)]."""
    B = h_chem.shape[0]
    desc_dim = y.shape[1]
    out_w = 3 * EMB_PAD if mode in ("shrink", "blend") else 2 * EMB_PAD

    tb = _pick_tile_b(B, tile_b)
    grid = (pl.cdiv(B, tb),)

    def row(n):            # batch-tiled block
        return pl.BlockSpec((tb, n), lambda i: (i, 0))

    def const(r, c):       # grid-resident weight block
        return pl.BlockSpec((r, c), lambda i: (0, 0))

    k_shrink = 2 * EMB_PAD if mode == "shrink" else 0
    flops = 2 * B * (CHEM_FEAT * EMB_PAD + desc_dim * HID_PAD
                     + HID_PAD * EMB_PAD + k_shrink * EMB_PAD)
    bytes_accessed = 4 * (B * (CHEM_FEAT + desc_dim + out_w)
                          + CHEM_FEAT * EMB_PAD + desc_dim * HID_PAD
                          + HID_PAD * EMB_PAD + 2 * EMB_PAD * EMB_PAD
                          + 4 * EMB_PAD)

    kernel = functools.partial(_fused_fusion_kernel, mode)

    slab = pl.pallas_call(
        kernel,
        out_shape=jax.ShapeDtypeStruct((B, out_w), jnp.float32),
        grid=grid,
        in_specs=[
            pl.BlockSpec(memory_space=pltpu.MemorySpace.SMEM),   # blend factor scalar
            row(CHEM_FEAT),                                      # pooled chem features
            row(desc_dim),                                       # descriptor vector
            const(CHEM_FEAT, EMB_PAD), const(1, EMB_PAD),        # chem projection
            const(desc_dim, HID_PAD),  const(1, HID_PAD),        # mlp layer 1
            const(HID_PAD, EMB_PAD),   const(1, EMB_PAD),        # mlp layer 2
            const(2 * EMB_PAD, EMB_PAD), const(1, EMB_PAD),      # shrink (packed K=256)
        ],
        out_specs=row(out_w),
        compiler_params=pltpu.CompilerParams(dimension_semantics=("parallel",)),
        cost_estimate=pl.CostEstimate(flops=flops, transcendentals=0,
                                      bytes_accessed=bytes_accessed),
    )(factor, h_chem, y,
      params["wc"], params["bc"],
      params["w1"], params["b1"],
      params["w2"], params["b2"],
      params["ws"], params["bs"])
    return slab


# ----------------------------------------------------------------------------
# Fusion_Model port
# ----------------------------------------------------------------------------
class FusionModelPallas:
    def __init__(self, key, fusion="concat", in_ch=4, desc_dim=32, hidden=64):
        self.fusion = fusion
        ks = jax.random.split(key, 10)

        # --- Fusion_Model's own parameters (deterministic synthetic init) ---
        self.nh_factor = jax.random.uniform(ks[0], (1,), jnp.float32)          # torch.rand(1)
        self.nh_factor_mtrx = jax.random.uniform(ks[1], (1, EMB), jnp.float32)
        # shrink_layer1: Linear(2, 1) -- only valid when both embeddings are width 1
        self.w_shrink1 = jax.random.normal(ks[2], (2, 1), jnp.float32) * 0.5
        self.b_shrink1 = jnp.zeros((1,), jnp.float32)
        # shrink_layer2: Linear(252, 126), stored (in, out)
        w_shrink2 = jax.random.normal(ks[3], (2 * EMB, EMB), jnp.float32) * 0.05
        b_shrink2 = jnp.zeros((EMB,), jnp.float32)

        # --- stand-in "trained_chemception": conv3x3 -> relu -> GAP -> linear(.., 126) ---
        self.conv_w = jax.random.normal(ks[4], (CHEM_FEAT, in_ch, 3, 3), jnp.float32) * 0.1
        self.conv_b = jnp.zeros((CHEM_FEAT,), jnp.float32)
        chem_proj_w = jax.random.normal(ks[5], (CHEM_FEAT, EMB), jnp.float32) * 0.2
        chem_proj_b = jnp.zeros((EMB,), jnp.float32)

        # --- stand-in "trained_mlp": linear -> relu -> linear(.., 126) ---
        mlp_w1 = jax.random.normal(ks[6], (desc_dim, hidden), jnp.float32) * 0.1
        mlp_b1 = jnp.zeros((hidden,), jnp.float32)
        mlp_w2 = jax.random.normal(ks[7], (hidden, EMB), jnp.float32) * 0.1
        mlp_b2 = jnp.zeros((EMB,), jnp.float32)

        # --- zero-pad / pack everything lane-dense ONCE (no per-call slicing) ---
        pad_c = EMB_PAD - EMB
        pad_h = HID_PAD - hidden
        pad_vec = lambda b: jnp.pad(b, (0, pad_c)).reshape(1, EMB_PAD)
        self.params = {
            "wc": jnp.pad(chem_proj_w, ((0, 0), (0, pad_c))),                   # (8, 128)
            "bc": pad_vec(chem_proj_b),                                         # (1, 128)
            "w1": jnp.pad(mlp_w1, ((0, 0), (0, pad_h))),                        # (desc, 128)
            "b1": jnp.pad(mlp_b1, (0, pad_h)).reshape(1, HID_PAD),              # (1, 128)
            "w2": jnp.pad(mlp_w2, ((0, pad_h), (0, pad_c))),                    # (128, 128)
            "b2": pad_vec(mlp_b2),                                              # (1, 128)
            # packed shrink weight: one resident (256, 128) block, K=256 dot
            "ws": jnp.concatenate(
                [jnp.pad(w_shrink2[:EMB], ((0, pad_c), (0, pad_c))),
                 jnp.pad(w_shrink2[EMB:], ((0, pad_c), (0, pad_c)))], axis=0),  # (256, 128)
            "bs": pad_vec(b_shrink2),                                           # (1, 128)
        }

        self.fusion_dict = {"emb_chemception_section_num": -1, "emb_mlp_layer_num": -1}

    # stand-in chemception front end (plain JAX glue: conv + GAP has no clean Pallas form)
    def _chem_features(self, x):  # x: NCHW -> (B, CHEM_FEAT)
        h = lax.conv_general_dilated(
            x, self.conv_w, window_strides=(1, 1), padding="SAME",
            dimension_numbers=("NCHW", "OIHW", "NCHW"))
        h = jnp.maximum(h + self.conv_b[None, :, None, None], 0.0)
        return jnp.mean(h, axis=(2, 3))

    def __call__(self, x, y):
        h_chem = self._chem_features(x)

        # map the (static) fusion option onto a fused-kernel mode + blend factor
        if self.fusion in ("no_harm", "no_harm_matrix"):
            # PyTorch no_harm_matrix uses the SCALAR nh_factor for width-126
            # embeddings; the (1,126) matrix only applies to the width-1 edge case.
            mode, factor = "blend", self.nh_factor
        elif self.fusion == "avg":
            mode, factor = "blend", jnp.array([0.5], jnp.float32)
        elif self.fusion == "shrink":
            mode, factor = "shrink", jnp.zeros((1,), jnp.float32)
        elif self.fusion in ("no_model1", "no_model2", "concat", "tf"):
            mode, factor = "embed", jnp.zeros((1,), jnp.float32)
        else:
            raise ValueError(f"No such fusion option as {self.fusion}")

        slab = fused_fusion_forward(
            mode, factor.reshape(1, 1).astype(jnp.float32), h_chem, y, self.params)

        # slice back to the logical 126-wide embeddings only at the very end
        chem_emb = slab[:, :EMB]
        decpt_emb = slab[:, EMB_PAD:EMB_PAD + EMB]
        chem_n, decpt_n = chem_emb.shape[1], decpt_emb.shape[1]
        # NOTE: attribute stashing mirrors the PyTorch module; eager-only (not jit-pure).
        self.chem_emb = chem_emb
        self.decpt_emb = decpt_emb

        def kernel_combined():
            return slab[:, 2 * EMB_PAD:2 * EMB_PAD + EMB]

        if self.fusion == "no_harm":
            if chem_n != decpt_n:
                return (None, None)
            combined = kernel_combined()
        elif self.fusion == "no_harm_matrix":
            if chem_n != decpt_n:
                return (None, None)
            if decpt_n == 1:
                # matrix blend over width-1 embeddings (mirrors PyTorch broadcasting); tiny glue
                combined = (1.0 - self.nh_factor_mtrx) * chem_emb + self.nh_factor_mtrx * decpt_emb
            else:
                combined = kernel_combined()
        elif self.fusion == "no_model1":
            combined = decpt_emb
        elif self.fusion == "no_model2":
            combined = chem_emb
        elif self.fusion == "shrink":
            if decpt_n == EMB and chem_n == EMB:
                combined = kernel_combined()
            elif decpt_n == 1 and chem_n == 1:
                # Linear(2,1): 1-lane output -> pure JAX is strictly faster than a kernel
                cat = jnp.concatenate([chem_emb, decpt_emb], axis=1)
                combined = jnp.maximum(cat @ self.w_shrink1 + self.b_shrink1, 0.0)
            else:
                return (None, None)
        elif self.fusion == "avg":
            if chem_n != decpt_n:
                return (None, None)
            combined = kernel_combined()
        elif self.fusion == "tf":
            # tiny batched outer product of homogeneous embeddings -- XLA glue
            ones = jnp.ones((chem_emb.shape[0], 1), jnp.float32)
            ch = jnp.concatenate([ones, chem_emb], axis=1)
            dh = jnp.concatenate([ones, decpt_emb], axis=1)
            combined = jnp.einsum("bi,bj->bij", ch, dh).reshape(chem_emb.shape[0], -1)
        else:  # concat
            combined = jnp.concatenate([chem_emb, decpt_emb], axis=1)

        self.fusion_dict["fusion"] = self.fusion
        self.fusion_dict["fusion_neurons"] = combined.shape[1]
        return (combined, combined.shape[1])


# ----------------------------------------------------------------------------
if __name__ == "__main__":
    key = jax.random.PRNGKey(0)
    kx, ky, kp = jax.random.split(key, 3)

    x = jax.random.normal(kx, (2, 4, 16, 16), jnp.float32)   # NCHW image for chemception
    y = jax.random.normal(ky, (2, 32), jnp.float32)          # descriptor vector for MLP

    # ---- 'shrink' exercises the fused K=256 matmul + ReLU epilogue ----
    m_s = FusionModelPallas(kp, fusion="shrink")
    out_s, n_s = m_s(x, y)
    jax.block_until_ready(out_s)
    assert out_s.shape == (2, EMB) and n_s == EMB

    # full pure-JAX reference of the fused pipeline
    p = m_s.params
    h_ref = m_s._chem_features(x)
    chem_ref = h_ref @ p["wc"][:, :EMB] + p["bc"][0, :EMB]
    hid_ref = jnp.maximum(y @ p["w1"] + p["b1"][0], 0.0)          # padded hidden lanes are 0
    decpt_ref = (hid_ref @ p["w2"])[:, :EMB] + p["b2"][0, :EMB]
    w252 = jnp.concatenate([p["ws"][:EMB, :EMB],
                            p["ws"][EMB_PAD:EMB_PAD + EMB, :EMB]], axis=0)
    shrink_ref = jnp.maximum(
        jnp.concatenate([chem_ref, decpt_ref], axis=1) @ w252 + p["bs"][0, :EMB], 0.0)
    assert jnp.allclose(out_s, shrink_ref, atol=1e-4)
    assert jnp.allclose(m_s.chem_emb, chem_ref, atol=1e-4)
    assert jnp.allclose(m_s.decpt_emb, decpt_ref, atol=1e-4)

    # ---- 'no_harm' exercises the fused scalar blend epilogue ----
    m_n = FusionModelPallas(kp, fusion="no_harm")
    out_n, n_n = m_n(x, y)
    jax.block_until_ready(out_n)
    assert out_n.shape == (2, EMB)
    blend_ref = (1.0 - m_n.nh_factor) * m_n.chem_emb + m_n.nh_factor * m_n.decpt_emb
    assert jnp.allclose(out_n, blend_ref, atol=1e-5)

    # ---- 'avg' (blend with a = 0.5) ----
    m_a = FusionModelPallas(kp, fusion="avg")
    out_a, n_a = m_a(x, y)
    jax.block_until_ready(out_a)
    assert jnp.allclose(out_a, 0.5 * (m_a.chem_emb + m_a.decpt_emb), atol=1e-5)

    # ---- 'concat' / 'no_model2' use the 256-wide embed-only slab (no comb store) ----
    m_c = FusionModelPallas(kp, fusion="concat")
    out_c, n_c = m_c(x, y)
    jax.block_until_ready(out_c)
    assert out_c.shape == (2, 2 * EMB) and n_c == 2 * EMB
    assert jnp.allclose(out_c[:, :EMB], m_c.chem_emb, atol=1e-5)
    assert jnp.allclose(out_c[:, EMB:], m_c.decpt_emb, atol=1e-5)

    m_2 = FusionModelPallas(kp, fusion="no_model2")
    out_2, n_2 = m_2(x, y)
    jax.block_until_ready(out_2)
    assert out_2.shape == (2, EMB) and n_2 == EMB

    print("KERNEL_OK")
</pallas_src>

<mosaic_0001>
module attributes {stable_mosaic.version = 11 : i64} {
  func.func @_fused_fusion_kernel(%arg0: i32, %arg1: memref<1x1xf32, #tpu.memory_space<smem>>, %arg2: memref<2x8xf32, #tpu.memory_space<vmem>>, %arg3: memref<2x32xf32, #tpu.memory_space<vmem>>, %arg4: memref<8x128xf32, #tpu.memory_space<vmem>>, %arg5: memref<1x128xf32, #tpu.memory_space<vmem>>, %arg6: memref<32x128xf32, #tpu.memory_space<vmem>>, %arg7: memref<1x128xf32, #tpu.memory_space<vmem>>, %arg8: memref<128x128xf32, #tpu.memory_space<vmem>>, %arg9: memref<1x128xf32, #tpu.memory_space<vmem>>, %arg10: memref<256x128xf32, #tpu.memory_space<vmem>>, %arg11: memref<1x128xf32, #tpu.memory_space<vmem>>, %arg12: memref<2x384xf32, #tpu.memory_space<vmem>>) attributes {dimension_semantics = [#tpu.dimension_semantics<parallel>], iteration_bounds = array<i64: 1>, scalar_prefetch = 0 : i64, scratch_operands = 0 : i64, tpu.core_type = #tpu.core_type<tc>, window_params = [{transform_indices = @transform_0, window_bounds = array<i64: 1, 1>}, {transform_indices = @transform_1, window_bounds = array<i64: 2, 8>}, {transform_indices = @transform_2, window_bounds = array<i64: 2, 32>}, {pipeline_mode = #tpu.pipeline_mode<synchronous>, transform_indices = @transform_3, window_bounds = array<i64: 8, 128>}, {pipeline_mode = #tpu.pipeline_mode<synchronous>, transform_indices = @transform_4, window_bounds = array<i64: 1, 128>}, {pipeline_mode = #tpu.pipeline_mode<synchronous>, transform_indices = @transform_5, window_bounds = array<i64: 32, 128>}, {pipeline_mode = #tpu.pipeline_mode<synchronous>, transform_indices = @transform_6, window_bounds = array<i64: 1, 128>}, {pipeline_mode = #tpu.pipeline_mode<synchronous>, transform_indices = @transform_7, window_bounds = array<i64: 128, 128>}, {pipeline_mode = #tpu.pipeline_mode<synchronous>, transform_indices = @transform_8, window_bounds = array<i64: 1, 128>}, {pipeline_mode = #tpu.pipeline_mode<synchronous>, transform_indices = @transform_9, window_bounds = array<i64: 256, 128>}, {pipeline_mode = #tpu.pipeline_mode<synchronous>, transform_indices = @transform_10, window_bounds = array<i64: 1, 128>}, {transform_indices = @transform_11, window_bounds = array<i64: 2, 384>}]} {
    %c0 = arith.constant 0 : index
    %c0_0 = arith.constant 0 : index
    %0 = vector.load %arg2[%c0, %c0_0] : memref<2x8xf32, #tpu.memory_space<vmem>>, vector<2x8xf32>
    %c0_1 = arith.constant 0 : index
    %c0_2 = arith.constant 0 : index
    %1 = vector.load %arg4[%c0_1, %c0_2] : memref<8x128xf32, #tpu.memory_space<vmem>>, vector<8x128xf32>
    %cst = arith.constant dense<0.000000e+00> : vector<2x128xf32>
    %2 = tpu.matmul %0, %1, %cst {dimension_numbers = #tpu.dot_dimension_numbers<[1], [0], [0], [1], [0, 0, 1, 1], [], []>} : vector<2x8xf32>, vector<8x128xf32>, vector<2x128xf32> -> vector<2x128xf32>
    %c0_3 = arith.constant 0 : index
    %c0_4 = arith.constant 0 : index
    %3 = vector.load %arg5[%c0_3, %c0_4] : memref<1x128xf32, #tpu.memory_space<vmem>>, vector<1x128xf32>
    %4 = vector.broadcast %3 : vector<1x128xf32> to vector<2x128xf32>
    %5 = arith.addf %2, %4 : vector<2x128xf32>
    %c0_5 = arith.constant 0 : index
    %c0_6 = arith.constant 0 : index
    %6 = vector.load %arg3[%c0_5, %c0_6] : memref<2x32xf32, #tpu.memory_space<vmem>>, vector<2x32xf32>
    %c0_7 = arith.constant 0 : index
    %c0_8 = arith.constant 0 : index
    %7 = vector.load %arg6[%c0_7, %c0_8] : memref<32x128xf32, #tpu.memory_space<vmem>>, vector<32x128xf32>
    %cst_9 = arith.constant dense<0.000000e+00> : vector<2x128xf32>
    %8 = tpu.matmul %6, %7, %cst_9 {dimension_numbers = #tpu.dot_dimension_numbers<[1], [0], [0], [1], [0, 0, 1, 1], [], []>} : vector<2x32xf32>, vector<32x128xf32>, vector<2x128xf32> -> vector<2x128xf32>
    %c0_10 = arith.constant 0 : index
    %c0_11 = arith.constant 0 : index
    %9 = vector.load %arg7[%c0_10, %c0_11] : memref<1x128xf32, #tpu.memory_space<vmem>>, vector<1x128xf32>
    %10 = vector.broadcast %9 : vector<1x128xf32> to vector<2x128xf32>
    %11 = arith.addf %8, %10 : vector<2x128xf32>
    %cst_12 = arith.constant 0.000000e+00 : f32
    %12 = vector.broadcast %cst_12 : f32 to vector<2x128xf32>
    %13 = arith.maximumf %11, %12 : vector<2x128xf32>
    %c0_13 = arith.constant 0 : index
    %c0_14 = arith.constant 0 : index
    %14 = vector.load %arg8[%c0_13, %c0_14] : memref<128x128xf32, #tpu.memory_space<vmem>>, vector<128x128xf32>
    %cst_15 = arith.constant dense<0.000000e+00> : vector<2x128xf32>
    %15 = tpu.matmul %13, %14, %cst_15 {dimension_numbers = #tpu.dot_dimension_numbers<[1], [0], [0], [1], [0, 0, 1, 1], [], []>} : vector<2x128xf32>, vector<128x128xf32>, vector<2x128xf32> -> vector<2x128xf32>
    %c0_16 = arith.constant 0 : index
    %c0_17 = arith.constant 0 : index
    %16 = vector.load %arg9[%c0_16, %c0_17] : memref<1x128xf32, #tpu.memory_space<vmem>>, vector<1x128xf32>
    %17 = vector.broadcast %16 : vector<1x128xf32> to vector<2x128xf32>
    %18 = arith.addf %15, %17 : vector<2x128xf32>
    %19 = tpu.concatenate %5, %18 in 1 : vector<2x128xf32>, vector<2x128xf32> -> vector<2x256xf32>
    %c0_18 = arith.constant 0 : index
    %c0_19 = arith.constant 0 : index
    %20 = vector.load %arg12[%c0_18, %c0_19] : memref<2x384xf32, #tpu.memory_space<vmem>>, vector<2x256xf32>
    tpu.vector_store %arg12[%c0_18, %c0_19], %19 {strides = array<i32>} : memref<2x384xf32, #tpu.memory_space<vmem>>, vector<2x256xf32>,
    %c0_20 = arith.constant 0 : index
    %c0_21 = arith.constant 0 : index
    %21 = vector.load %arg10[%c0_20, %c0_21] : memref<256x128xf32, #tpu.memory_space<vmem>>, vector<256x128xf32>
    %cst_22 = arith.constant dense<0.000000e+00> : vector<2x128xf32>
    %22 = tpu.matmul %19, %21, %cst_22 {dimension_numbers = #tpu.dot_dimension_numbers<[1], [0], [0], [1], [0, 0, 1, 1], [], []>} : vector<2x256xf32>, vector<256x128xf32>, vector<2x128xf32> -> vector<2x128xf32>
    %c0_23 = arith.constant 0 : index
    %c0_24 = arith.constant 0 : index
    %23 = vector.load %arg11[%c0_23, %c0_24] : memref<1x128xf32, #tpu.memory_space<vmem>>, vector<1x128xf32>
    %24 = vector.broadcast %23 : vector<1x128xf32> to vector<2x128xf32>
    %25 = arith.addf %22, %24 : vector<2x128xf32>
    %cst_25 = arith.constant 0.000000e+00 : f32
    %26 = vector.broadcast %cst_25 : f32 to vector<2x128xf32>
    %27 = arith.maximumf %25, %26 : vector<2x128xf32>
    %c0_26 = arith.constant 0 : index
    %c256 = arith.constant 256 : index
    %28 = vector.load %arg12[%c0_26, %c256] : memref<2x384xf32, #tpu.memory_space<vmem>>, vector<2x128xf32>
    tpu.vector_store %arg12[%c0_26, %c256], %27 {strides = array<i32>} : memref<2x384xf32, #tpu.memory_space<vmem>>, vector<2x128xf32>,
    return
  }
  func.func @transform_0(%arg0: i32) -> (i32, i32) {
    %c0_i32 = arith.constant 0 : i32
    %c0_i32_0 = arith.constant 0 : i32
    %c0_i32_1 = arith.constant 0 : i32
    return %c0_i32, %c0_i32_0 : i32, i32
  }
  func.func @transform_1(%arg0: i32) -> (i32, i32) {
    %c0_i32 = arith.constant 0 : i32
    %c0_i32_0 = arith.constant 0 : i32
    return %arg0, %c0_i32 : i32, i32
  }
  func.func @transform_2(%arg0: i32) -> (i32, i32) {
    %c0_i32 = arith.constant 0 : i32
    %c0_i32_0 = arith.constant 0 : i32
    return %arg0, %c0_i32 : i32, i32
  }
  func.func @transform_3(%arg0: i32) -> (i32, i32) {
    %c0_i32 = arith.constant 0 : i32
    %c0_i32_0 = arith.constant 0 : i32
    %c0_i32_1 = arith.constant 0 : i32
    return %c0_i32, %c0_i32_0 : i32, i32
  }
  func.func @transform_4(%arg0: i32) -> (i32, i32) {
    %c0_i32 = arith.constant 0 : i32
    %c0_i32_0 = arith.constant 0 : i32
    %c0_i32_1 = arith.constant 0 : i32
    return %c0_i32, %c0_i32_0 : i32, i32
  }
  func.func @transform_5(%arg0: i32) -> (i32, i32) {
    %c0_i32 = arith.constant 0 : i32
    %c0_i32_0 = arith.constant 0 : i32
    %c0_i32_1 = arith.constant 0 : i32
    return %c0_i32, %c0_i32_0 : i32, i32
  }
  func.func @transform_6(%arg0: i32) -> (i32, i32) {
    %c0_i32 = arith.constant 0 : i32
    %c0_i32_0 = arith.constant 0 : i32
    %c0_i32_1 = arith.constant 0 : i32
    return %c0_i32, %c0_i32_0 : i32, i32
  }
  func.func @transform_7(%arg0: i32) -> (i32, i32) {
    %c0_i32 = arith.constant 0 : i32
    %c0_i32_0 = arith.constant 0 : i32
    %c0_i32_1 = arith.constant 0 : i32
    return %c0_i32, %c0_i32_0 : i32, i32
  }
  func.func @transform_8(%arg0: i32) -> (i32, i32) {
    %c0_i32 = arith.constant 0 : i32
    %c0_i32_0 = arith.constant 0 : i32
    %c0_i32_1 = arith.constant 0 : i32
    return %c0_i32, %c0_i32_0 : i32, i32
  }
  func.func @transform_9(%arg0: i32) -> (i32, i32) {
    %c0_i32 = arith.constant 0 : i32
    %c0_i32_0 = arith.constant 0 : i32
    %c0_i32_1 = arith.constant 0 : i32
    return %c0_i32, %c0_i32_0 : i32, i32
  }
  func.func @transform_10(%arg0: i32) -> (i32, i32) {
    %c0_i32 = arith.constant 0 : i32
    %c0_i32_0 = arith.constant 0 : i32
    %c0_i32_1 = arith.constant 0 : i32
    return %c0_i32, %c0_i32_0 : i32, i32
  }
  func.func @transform_11(%arg0: i32) -> (i32, i32) {
    %c0_i32 = arith.constant 0 : i32
    %c0_i32_0 = arith.constant 0 : i32
    return %arg0, %c0_i32 : i32, i32
  }
}

</mosaic_0001>

<llo_original>
// kernel: tpu_custom_call.1
$region0: #{tpu_custom_call.1}
  #allocation0 [shape = 'u32[]', space=smem, size = 0x4, offset = 0x4, fixed_abs, tag = 'smem constant byte address 0x4 - core index']
  #allocation1 [shape = 'u32[144,128]{1,0:T(1,128)}', space=vmem, size = 0x12000, scoped, tag = 'internal scratch']
  #allocation2 [shape = 'f32[1,1]{1,0:T(1,128)S(6)}', space=smem, size = 0x200, scoped, tag = 'scoped memory for tpu_custom_call.1']
  %s0 = inlined_call_operand.<no memory space> [shape: f32[1,1], index: 0, kind: input, shape index: {}]
  %s1 = inlined_call_operand.vmem [shape: f32[2,8], index: 1, kind: input, shape index: {}]
  %s2 = inlined_call_operand.hbm [shape: f32[2,32], index: 2, kind: input, shape index: {}]
  %s3 = inlined_call_operand.vmem [shape: f32[8,128], index: 3, kind: input, shape index: {}]
  %s4 = inlined_call_operand.vmem [shape: f32[1,128], index: 4, kind: input, shape index: {}]
  %s5 = inlined_call_operand.hbm [shape: f32[32,128], index: 5, kind: input, shape index: {}]
  %s6 = inlined_call_operand.vmem [shape: f32[1,128], index: 6, kind: input, shape index: {}]
  %s7 = inlined_call_operand.hbm [shape: f32[128,128], index: 7, kind: input, shape index: {}]
  %s8 = inlined_call_operand.vmem [shape: f32[1,128], index: 8, kind: input, shape index: {}]
  %s9 = inlined_call_operand.hbm [shape: f32[256,128], index: 9, kind: input, shape index: {}]
  %s10 = inlined_call_operand.vmem [shape: f32[1,128], index: 10, kind: input, shape index: {}]
  %s11 = inlined_call_operand.hbm [shape: f32[2,384], index: 11, kind: output, shape index: {}]
  %s12 = sld [smem:[#allocation0]]
  $region70: #{tpu_custom_call.1} parent=0
    _
  %s14 = ssub.s32 1, %s12
  %s15 = scalar_select 0, %s14, %s12
  %16 = sst [smem:[#allocation2]] %s0
  $region1: #{tpu_custom_call.1} parent=0
    #allocation3 [shape = 'u8[1024]{0}', space=vmem, size = 0x400, scoped, tag = 'input window, operand 2, single buffered']
    #allocation4 [shape = 's32[1]{0}', space=sflag, size = 0x4, scoped, tag = 'scoped memory for tpu_custom_call.1']
    #allocation5 [shape = 's32[1]{0}', space=sflag, size = 0x4, scoped, tag = 'scoped memory for tpu_custom_call.1']
    #allocation6 [shape = 'u8[16384]{0}', space=vmem, size = 0x4000, scoped, tag = 'input window, operand 5, single buffered']
    #allocation7 [shape = 's32[1]{0}', space=sflag, size = 0x4, scoped, tag = 'scoped memory for tpu_custom_call.1']
    #allocation8 [shape = 'u8[65536]{0}', space=vmem, size = 0x10000, scoped, tag = 'input window, operand 7, single buffered']
    #allocation9 [shape = 'u8[131072]{0}', space=vmem, size = 0x20000, scoped, tag = 'input window, operand 9, single buffered']
    #allocation10 [shape = 's32[1]{0}', space=sflag, size = 0x4, scoped, tag = 'scoped memory for tpu_custom_call.1']
    #allocation11 [shape = 'u8[3072]{0}', space=vmem, size = 0xc00, scoped, tag = 'output window, operand 0, single buffered']
    %17 = vsyncpa [#allocation4], 0
    %18 = vsyncpa [#allocation7], 0
    %19 = vsyncpa [#allocation10], 0
    %20 = vsyncpa [#allocation5], 0
    // Predicated region
    $region2: #{tpu_custom_call.1} parent=1 // pred_check
      _
    $region3: #{tpu_custom_call.1} parent=1 // pred_check_branch
      %22 = sbr.rel (0) target = $region5
    $region4: #{tpu_custom_call.1} parent=1 // pred_region
      _
    $region5: #{tpu_custom_call.1} parent=1 // pred_fallthru
      _
    // Predicated region
    $region6: #{tpu_custom_call.1} parent=1 // pred_check
      _
    $region7: #{tpu_custom_call.1} parent=1 // pred_check_branch
      %24 = sbr.rel (0) target = $region9
    $region8: #{tpu_custom_call.1} parent=1 // pred_region
      _
    $region9: #{tpu_custom_call.1} parent=1 // pred_fallthru
      _
    // Predicated region
    $region10: #{tpu_custom_call.1} parent=1 // pred_check
      _
    $region11: #{tpu_custom_call.1} parent=1 // pred_check_branch
      %26 = sbr.rel (0) target = $region13
    $region12: #{tpu_custom_call.1} parent=1 // pred_region
      %s28 = ssub.s32 32, 32
      %29 = vsyncadd [#allocation4], %s28
      %s31 = sshll.u32 [#allocation3], 4
      %s32 = int_to_ptr.vmem [resolvable:$true] %s31
      %34 = dma.hbm_to_vmem [thread:$0]  %s2, 32, %s32, [#allocation4]
    $region13: #{tpu_custom_call.1} parent=1 // pred_fallthru
      _
    // Predicated region
    $region14: #{tpu_custom_call.1} parent=1 // pred_check
      _
    $region15: #{tpu_custom_call.1} parent=1 // pred_check_branch
      %36 = sbr.rel (0) target = $region17
    $region16: #{tpu_custom_call.1} parent=1 // pred_region
      _
    $region17: #{tpu_custom_call.1} parent=1 // pred_fallthru
      _
    // Predicated region
    $region18: #{tpu_custom_call.1} parent=1 // pred_check
      _
    $region19: #{tpu_custom_call.1} parent=1 // pred_check_branch
      %38 = sbr.rel (0) target = $region21
    $region20: #{tpu_custom_call.1} parent=1 // pred_region
      _
    $region21: #{tpu_custom_call.1} parent=1 // pred_fallthru
      _
    // Predicated region
    $region22: #{tpu_custom_call.1} parent=1 // pred_check
      _
    $region23: #{tpu_custom_call.1} parent=1 // pred_check_branch
      %40 = sbr.rel (0) target = $region25
    $region24: #{tpu_custom_call.1} parent=1 // pred_region
      %s42 = ssub.s32 512, 512
      %43 = vsyncadd [#allocation7], %s42
      %s44 = sshll.u32 [#allocation6], 4
      %s45 = int_to_ptr.vmem [resolvable:$true] %s44
      %50 = dma.hbm_to_vmem [thread:$0]  %s5, 512, %s45, [#allocation7], 128, 128, 8
    $region25: #{tpu_custom_call.1} parent=1 // pred_fallthru
      _
    // Predicated region
    $region26: #{tpu_custom_call.1} parent=1 // pred_check
      _
    $region27: #{tpu_custom_call.1} parent=1 // pred_check_branch
      %52 = sbr.rel (0) target = $region29
    $region28: #{tpu_custom_call.1} parent=1 // pred_region
      _
    $region29: #{tpu_custom_call.1} parent=1 // pred_fallthru
      _
    // Predicated region
    $region30: #{tpu_custom_call.1} parent=1 // pred_check
      _
    $region31: #{tpu_custom_call.1} parent=1 // pred_check_branch
      %54 = sbr.rel (0) target = $region33
    $region32: #{tpu_custom_call.1} parent=1 // pred_region
      %s56 = ssub.s32 2048, 2048
      %57 = vsyncadd [#allocation7], %s56
      %s58 = sshll.u32 [#allocation8], 4
      %s59 = int_to_ptr.vmem [resolvable:$true] %s58
      %64 = dma.hbm_to_vmem [thread:$0]  %s7, 2048, %s59, [#allocation7], 128, 128, 8
    $region33: #{tpu_custom_call.1} parent=1 // pred_fallthru
      _
    // Predicated region
    $region34: #{tpu_custom_call.1} parent=1 // pred_check
      _
    $region35: #{tpu_custom_call.1} parent=1 // pred_check_branch
      %66 = sbr.rel (0) target = $region37
    $region36: #{tpu_custom_call.1} parent=1 // pred_region
      _
    $region37: #{tpu_custom_call.1} parent=1 // pred_fallthru
      _
    // Predicated region
    $region38: #{tpu_custom_call.1} parent=1 // pred_check
      _
    $region39: #{tpu_custom_call.1} parent=1 // pred_check_branch
      %68 = sbr.rel (0) target = $region41
    $region40: #{tpu_custom_call.1} parent=1 // pred_region
      %s70 = ssub.s32 4096, 4096
      %71 = vsyncadd [#allocation10], %s70
      %s72 = sshll.u32 [#allocation9], 4
      %s73 = int_to_ptr.vmem [resolvable:$true] %s72
      %78 = dma.hbm_to_vmem [thread:$0]  %s9, 4096, %s73, [#allocation10], 128, 128, 8
    $region41: #{tpu_custom_call.1} parent=1 // pred_fallthru
      _
    // Predicated region
    $region42: #{tpu_custom_call.1} parent=1 // pred_check
      _
    $region43: #{tpu_custom_call.1} parent=1 // pred_check_branch
      %80 = sbr.rel (0) target = $region45
    $region44: #{tpu_custom_call.1} parent=1 // pred_region
      _
    $region45: #{tpu_custom_call.1} parent=1 // pred_fallthru
      _
    // Predicated region
    $region46: #{tpu_custom_call.1} parent=1 // pred_check
      _
    $region47: #{tpu_custom_call.1} parent=1 // pred_check_branch
      %82 = sbr.rel (0) target = $region49
    $region48: #{tpu_custom_call.1} parent=1 // pred_region
      %83 = dma.done [#allocation4], 32
    $region49: #{tpu_custom_call.1} parent=1 // pred_fallthru
      _
    // Predicated region
    $region50: #{tpu_custom_call.1} parent=1 // pred_check
      _
    $region51: #{tpu_custom_call.1} parent=1 // pred_check_branch
      %85 = sbr.rel (0) target = $region53
    $region52: #{tpu_custom_call.1} parent=1 // pred_region
      %86 = dma.done [#allocation7], 512
    $region53: #{tpu_custom_call.1} parent=1 // pred_fallthru
      _
    // Predicated region
    $region54: #{tpu_custom_call.1} parent=1 // pred_check
      _
    $region55: #{tpu_custom_call.1} parent=1 // pred_check_branch
      %88 = sbr.rel (0) target = $region57
    $region56: #{tpu_custom_call.1} parent=1 // pred_region
      %89 = dma.done [#allocation7], 2048
    $region57: #{tpu_custom_call.1} parent=1 // pred_fallthru
      _
    // Predicated region
    $region58: #{tpu_custom_call.1} parent=1 // pred_check
      _
    $region59: #{tpu_custom_call.1} parent=1 // pred_check_branch
      %91 = sbr.rel (0) target = $region61
    $region60: #{tpu_custom_call.1} parent=1 // pred_region
      %92 = dma.done [#allocation10], 4096
    $region61: #{tpu_custom_call.1} parent=1 // pred_fallthru
      _
    %v93 = vld [vmem:[%s1] sm:$0x3]
    %v94 = vld [vmem:[%s3] sm:$0xff]
    %v95 = vld [vmem:[%s4] sm:$0x1]
    %v97 = vlaneseq
    %v98 = vshrl.u32 %v97, 7
    %v99 = vsub.s32 0, %v98
    %v100 = vrot.slane %v95, %v99
    %vm102 = vcmask 64512
    %v104 = vsel %vm102, %v93, 0
    %106 = vmatprep.subr.mxu0 0.0
    %107 = vmatpush1.msra.mxu0 %v94
    %108 = vmatprep.subr.mxu0 0.0
    %109 = vmatpush1.msra.mxu0 0.0
    %110 = vmatprep.subr.mxu0 0.0
    %111 = vmatpush1.msra.mxu0 0.0
    %112 = vmatprep.subr.mxu0 0.0
    %113 = vmatpush1.msra.mxu0 0.0
    %114 = vmatprep.subr.mxu0 0.0
    %115 = vmatpush1.msra.mxu0 0.0
    %116 = vmatprep.subr.mxu0 0.0
    %117 = vmatpush1.msra.mxu0 0.0
    %118 = vmatprep.subr.mxu0 0.0
    %119 = vmatpush1.msra.mxu0 0.0
    %120 = vmatprep.subr.mxu0 0.0
    %121 = vmatpush1.msra.mxu0 0.0
    %122 = vmatprep.subr.mxu0 0.0
    %123 = vmatpush1.msra.mxu0 0.0
    %124 = vmatprep.subr.mxu0 0.0
    %125 = vmatpush1.msra.mxu0 0.0
    %126 = vmatprep.subr.mxu0 0.0
    %127 = vmatpush1.msra.mxu0 0.0
    %128 = vmatprep.subr.mxu0 0.0
    %129 = vmatpush1.msra.mxu0 0.0
    %130 = vmatprep.subr.mxu0 0.0
    %131 = vmatpush1.msra.mxu0 0.0
    %132 = vmatprep.subr.mxu0 0.0
    %133 = vmatpush1.msra.mxu0 0.0
    %134 = vmatprep.subr.mxu0 0.0
    %135 = vmatpush1.msra.mxu0 0.0
    %136 = vmatprep.subr.mxu0 0.0
    %137 = vmatpush1.msra.mxu0 0.0
    %138 = vmatprep.subr.mxu0 0.0
    %139 = vmatpush1.msra.mxu0 0.0
    %140 = vmatprep.subr.mxu0 0.0
    %141 = vmatpush1.msra.mxu0 0.0
    %142 = vmatprep.subr.mxu0 0.0
    %143 = vmatpush1.msra.mxu0 0.0
    %144 = vmatprep.subr.mxu0 0.0
    %145 = vmatpush1.msra.mxu0 0.0
    %146 = vmatprep.subr.mxu0 0.0
    %147 = vmatpush1.msra.mxu0 0.0
    %148 = vmatprep.subr.mxu0 0.0
    %149 = vmatpush1.msra.mxu0 0.0
    %150 = vmatprep.subr.mxu0 0.0
    %151 = vmatpush1.msra.mxu0 0.0
    %152 = vmatprep.subr.mxu0 0.0
    %153 = vmatpush1.msra.mxu0 0.0
    %154 = vmatprep.subr.mxu0 0.0
    %155 = vmatpush1.msra.mxu0 0.0
    %156 = vmatprep.subr.mxu0 0.0
    %157 = vmatpush1.msra.mxu0 0.0
    %158 = vmatprep.subr.mxu0 0.0
    %159 = vmatpush1.msra.mxu0 0.0
    %160 = vmatprep.subr.mxu0 0.0
    %161 = vmatpush1.msra.mxu0 0.0
    %162 = vmatprep.subr.mxu0 0.0
    %163 = vmatpush1.msra.mxu0 0.0
    %164 = vmatprep.subr.mxu0 0.0
    %165 = vmatpush1.msra.mxu0 0.0
    %166 = vmatprep.subr.mxu0 0.0
    %167 = vmatpush1.msra.mxu0 0.0
    %168 = vmatprep.subr.mxu0 0.0
    %169 = vmatpush1.msra.mxu0 0.0
    %170 = vmatprep.mubr.f32.mxu0 0.0
    %171 = vmatmul.mubr.f32.gmra.mrb[0].mxu0 %v104
    %v172 = vpop.f32.mrb[0].mxu0
    %v173 = vadd.f32 %v100, %v172
    %v174 = vpop.f32.mrb[0].mxu0
    %175 = vdwg.mxu0
    %v176 = vld [vmem:[#allocation3] sm:$0x3]
    %v177 = vld [vmem:[#allocation6] sm:$0xff]
    %v178 = vld [vmem:[#allocation6 + $0x8] sm:$0xff]
    %v179 = vld [vmem:[#allocation6 + $0x10] sm:$0xff]
    %v180 = vld [vmem:[#allocation6 + $0x18] sm:$0xff]
    %v181 = vld [vmem:[%s6] sm:$0x1]
    %v183 = vlaneseq
    %v184 = vshrl.u32 %v183, 7
    %v185 = vsub.s32 0, %v184
    %v186 = vrot.slane %v181, %v185
    %vm188 = vcmask 261120
    %v190 = vsel %vm188, %v176, 0
    %192 = vmatprep.subr.mxu0 0.0
    %193 = vmatpush1.msra.mxu0 %v177
    %194 = vmatprep.subr.mxu0 0.0
    %195 = vmatpush1.msra.mxu0 %v178
    %196 = vmatprep.subr.mxu0 0.0
    %197 = vmatpush1.msra.mxu0 %v179
    %198 = vmatprep.subr.mxu0 0.0
    %199 = vmatpush1.msra.mxu0 %v180
    %200 = vmatprep.subr.mxu0 0.0
    %201 = vmatpush1.msra.mxu0 0.0
    %202 = vmatprep.subr.mxu0 0.0
    %203 = vmatpush1.msra.mxu0 0.0
    %204 = vmatprep.subr.mxu0 0.0
    %205 = vmatpush1.msra.mxu0 0.0
    %206 = vmatprep.subr.mxu0 0.0
    %207 = vmatpush1.msra.mxu0 0.0
    %208 = vmatprep.subr.mxu0 0.0
    %209 = vmatpush1.msra.mxu0 0.0
    %210 = vmatprep.subr.mxu0 0.0
    %211 = vmatpush1.msra.mxu0 0.0
    %212 = vmatprep.subr.mxu0 0.0
    %213 = vmatpush1.msra.mxu0 0.0
    %214 = vmatprep.subr.mxu0 0.0
    %215 = vmatpush1.msra.mxu0 0.0
    %216 = vmatprep.subr.mxu0 0.0
    %217 = vmatpush1.msra.mxu0 0.0
    %218 = vmatprep.subr.mxu0 0.0
    %219 = vmatpush1.msra.mxu0 0.0
    %220 = vmatprep.subr.mxu0 0.0
    %221 = vmatpush1.msra.mxu0 0.0
    %222 = vmatprep.subr.mxu0 0.0
    %223 = vmatpush1.msra.mxu0 0.0
    %224 = vmatprep.subr.mxu0 0.0
    %225 = vmatpush1.msra.mxu0 0.0
    %226 = vmatprep.subr.mxu0 0.0
    %227 = vmatpush1.msra.mxu0 0.0
    %228 = vmatprep.subr.mxu0 0.0
    %229 = vmatpush1.msra.mxu0 0.0
    %230 = vmatprep.subr.mxu0 0.0
    %231 = vmatpush1.msra.mxu0 0.0
    %232 = vmatprep.subr.mxu0 0.0
    %233 = vmatpush1.msra.mxu0 0.0
    %234 = vmatprep.subr.mxu0 0.0
    %235 = vmatpush1.msra.mxu0 0.0
    %236 = vmatprep.subr.mxu0 0.0
    %237 = vmatpush1.msra.mxu0 0.0
    %238 = vmatprep.subr.mxu0 0.0
    %239 = vmatpush1.msra.mxu0 0.0
    %240 = vmatprep.subr.mxu0 0.0
    %241 = vmatpush1.msra.mxu0 0.0
    %242 = vmatprep.subr.mxu0 0.0
    %243 = vmatpush1.msra.mxu0 0.0
    %244 = vmatprep.subr.mxu0 0.0
    %245 = vmatpush1.msra.mxu0 0.0
    %246 = vmatprep.subr.mxu0 0.0
    %247 = vmatpush1.msra.mxu0 0.0
    %248 = vmatprep.subr.mxu0 0.0
    %249 = vmatpush1.msra.mxu0 0.0
    %250 = vmatprep.subr.mxu0 0.0
    %251 = vmatpush1.msra.mxu0 0.0
    %252 = vmatprep.subr.mxu0 0.0
    %253 = vmatpush1.msra.mxu0 0.0
    %254 = vmatprep.subr.mxu0 0.0
    %255 = vmatpush1.msra.mxu0 0.0
    %256 = vmatprep.mubr.f32.mxu0 0.0
    %257 = vmatmul.mubr.f32.gmra.mrb[0].mxu0 %v190
    %v258 = vpop.f32.mrb[0].mxu0
    %v259 = vadd.f32 %v186, %v258
    %v260 = vpop.f32.mrb[0].mxu0
    %261 = vdwg.mxu0
    %v262 = vmax.f32 %v259, 0.0
    %v263 = vld [vmem:[#allocation8] sm:$0xff]
    %v264 = vld [vmem:[#allocation8 + $0x8] sm:$0xff]
    %v265 = vld [vmem:[#allocation8 + $0x10] sm:$0xff]
    %v266 = vld [vmem:[#allocation8 + $0x18] sm:$0xff]
    %v267 = vld [vmem:[#allocation8 + $0x20] sm:$0xff]
    %v268 = vld [vmem:[#allocation8 + $0x28] sm:$0xff]
    %v269 = vld [vmem:[#allocation8 + $0x30] sm:$0xff]
    %v270 = vld [vmem:[#allocation8 + $0x38] sm:$0xff]
    %v271 = vld [vmem:[#allocation8 + $0x40] sm:$0xff]
    %v272 = vld [vmem:[#allocation8 + $0x48] sm:$0xff]
    %v273 = vld [vmem:[#allocation8 + $0x50] sm:$0xff]
    %v274 = vld [vmem:[#allocation8 + $0x58] sm:$0xff]
    %v275 = vld [vmem:[#allocation8 + $0x60] sm:$0xff]
    %v276 = vld [vmem:[#allocation8 + $0x68] sm:$0xff]
    %v277 = vld [vmem:[#allocation8 + $0x70] sm:$0xff]
    %v278 = vld [vmem:[#allocation8 + $0x78] sm:$0xff]
    %v279 = vld [vmem:[%s8] sm:$0x1]
    %v281 = vlaneseq
    %v282 = vshrl.u32 %v281, 7
    %v283 = vsub.s32 0, %v282
    %v284 = vrot.slane %v279, %v283
    %286 = vmatprep.subr.mxu0 0.0
    %287 = vmatpush1.msra.mxu0 %v263
    %288 = vmatprep.subr.mxu0 0.0
    %289 = vmatpush1.msra.mxu0 %v264
    %290 = vmatprep.subr.mxu0 0.0
    %291 = vmatpush1.msra.mxu0 %v265
    %292 = vmatprep.subr.mxu0 0.0
    %293 = vmatpush1.msra.mxu0 %v266
    %294 = vmatprep.subr.mxu0 0.0
    %295 = vmatpush1.msra.mxu0 %v267
    %296 = vmatprep.subr.mxu0 0.0
    %297 = vmatpush1.msra.mxu0 %v268
    %298 = vmatprep.subr.mxu0 0.0
    %299 = vmatpush1.msra.mxu0 %v269
    %300 = vmatprep.subr.mxu0 0.0
    %301 = vmatpush1.msra.mxu0 %v270
    %302 = vmatprep.subr.mxu0 0.0
    %303 = vmatpush1.msra.mxu0 %v271
    %304 = vmatprep.subr.mxu0 0.0
    %305 = vmatpush1.msra.mxu0 %v272
    %306 = vmatprep.subr.mxu0 0.0
    %307 = vmatpush1.msra.mxu0 %v273
    %308 = vmatprep.subr.mxu0 0.0
    %309 = vmatpush1.msra.mxu0 %v274
    %310 = vmatprep.subr.mxu0 0.0
    %311 = vmatpush1.msra.mxu0 %v275
    %312 = vmatprep.subr.mxu0 0.0
    %313 = vmatpush1.msra.mxu0 %v276
    %314 = vmatprep.subr.mxu0 0.0
    %315 = vmatpush1.msra.mxu0 %v277
    %316 = vmatprep.subr.mxu0 0.0
    %317 = vmatpush1.msra.mxu0 %v278
    %318 = vmatprep.subr.mxu0 0.0
    %319 = vmatpush1.msra.mxu0 0.0
    %320 = vmatprep.subr.mxu0 0.0
    %321 = vmatpush1.msra.mxu0 0.0
    %322 = vmatprep.subr.mxu0 0.0
    %323 = vmatpush1.msra.mxu0 0.0
    %324 = vmatprep.subr.mxu0 0.0
    %325 = vmatpush1.msra.mxu0 0.0
    %326 = vmatprep.subr.mxu0 0.0
    %327 = vmatpush1.msra.mxu0 0.0
    %328 = vmatprep.subr.mxu0 0.0
    %329 = vmatpush1.msra.mxu0 0.0
    %330 = vmatprep.subr.mxu0 0.0
    %331 = vmatpush1.msra.mxu0 0.0
    %332 = vmatprep.subr.mxu0 0.0
    %333 = vmatpush1.msra.mxu0 0.0
    %334 = vmatprep.subr.mxu0 0.0
    %335 = vmatpush1.msra.mxu0 0.0
    %336 = vmatprep.subr.mxu0 0.0
    %337 = vmatpush1.msra.mxu0 0.0
    %338 = vmatprep.subr.mxu0 0.0
    %339 = vmatpush1.msra.mxu0 0.0
    %340 = vmatprep.subr.mxu0 0.0
    %341 = vmatpush1.msra.mxu0 0.0
    %342 = vmatprep.subr.mxu0 0.0
    %343 = vmatpush1.msra.mxu0 0.0
    %344 = vmatprep.subr.mxu0 0.0
    %345 = vmatpush1.msra.mxu0 0.0
    %346 = vmatprep.subr.mxu0 0.0
    %347 = vmatpush1.msra.mxu0 0.0
    %348 = vmatprep.subr.mxu0 0.0
    %349 = vmatpush1.msra.mxu0 0.0
    %350 = vmatprep.mubr.f32.mxu0 0.0
    %351 = vmatmul.mubr.f32.gmra.mrb[0].mxu0 %v262
    %v352 = vpop.f32.mrb[0].mxu0
    %v353 = vadd.f32 %v284, %v352
    %v354 = vpop.f32.mrb[0].mxu0
    %355 = vdwg.mxu0
    %v358 = vcombine.low %v173, %v353
    %v360 = vunpack.c.l.s4 1983009808
    %v361 = vunpack.c.0.s8 %v360
    %v362 = vlaneseq
    %v363 = vshrl.u32 %v362, 7
    %v364 = vsub.s32 %v361, %v363
    %v365 = vrot.slane %v358, %v364
    %367 = vst [vmem:[#allocation11] sm:$0xf] %v365
    %v368 = vld [vmem:[#allocation9] sm:$0xff]
    %v369 = vld [vmem:[#allocation9 + $0x8] sm:$0xff]
    %v370 = vld [vmem:[#allocation9 + $0x10] sm:$0xff]
    %v371 = vld [vmem:[#allocation9 + $0x18] sm:$0xff]
    %v372 = vld [vmem:[#allocation9 + $0x20] sm:$0xff]
    %v373 = vld [vmem:[#allocation9 + $0x28] sm:$0xff]
    %v374 = vld [vmem:[#allocation9 + $0x30] sm:$0xff]
    %v375 = vld [vmem:[#allocation9 + $0x38] sm:$0xff]
    %v376 = vld [vmem:[#allocation9 + $0x40] sm:$0xff]
    %v377 = vld [vmem:[#allocation9 + $0x48] sm:$0xff]
    %v378 = vld [vmem:[#allocation9 + $0x50] sm:$0xff]
    %v379 = vld [vmem:[#allocation9 + $0x58] sm:$0xff]
    %v380 = vld [vmem:[#allocation9 + $0x60] sm:$0xff]
    %v381 = vld [vmem:[#allocation9 + $0x68] sm:$0xff]
    %v382 = vld [vmem:[#allocation9 + $0x70] sm:$0xff]
    %v383 = vld [vmem:[#allocation9 + $0x78] sm:$0xff]
    %v384 = vld [vmem:[#allocation9 + $0x80] sm:$0xff]
    %v385 = vld [vmem:[#allocation9 + $0x88] sm:$0xff]
    %v386 = vld [vmem:[#allocation9 + $0x90] sm:$0xff]
    %v387 = vld [vmem:[#allocation9 + $0x98] sm:$0xff]
    %v388 = vld [vmem:[#allocation9 + $0xa0] sm:$0xff]
    %v389 = vld [vmem:[#allocation9 + $0xa8] sm:$0xff]
    %v390 = vld [vmem:[#allocation9 + $0xb0] sm:$0xff]
    %v391 = vld [vmem:[#allocation9 + $0xb8] sm:$0xff]
    %v392 = vld [vmem:[#allocation9 + $0xc0] sm:$0xff]
    %v393 = vld [vmem:[#allocation9 + $0xc8] sm:$0xff]
    %v394 = vld [vmem:[#allocation9 + $0xd0] sm:$0xff]
    %v395 = vld [vmem:[#allocation9 + $0xd8] sm:$0xff]
    %v396 = vld [vmem:[#allocation9 + $0xe0] sm:$0xff]
    %v397 = vld [vmem:[#allocation9 + $0xe8] sm:$0xff]
    %v398 = vld [vmem:[#allocation9 + $0xf0] sm:$0xff]
    %v399 = vld [vmem:[#allocation9 + $0xf8] sm:$0xff]
    %v400 = vld [vmem:[%s10] sm:$0x1]
    %v402 = vlaneseq
    %v403 = vshrl.u32 %v402, 7
    %v404 = vsub.s32 0, %v403
    %v405 = vrot.slane %v400, %v404
    %407 = vmatprep.subr.mxu0 0.0
    %408 = vmatpush1.msra.mxu0 %v368
    %409 = vmatprep.subr.mxu0 0.0
    %410 = vmatpush1.msra.mxu0 %v369
    %411 = vmatprep.subr.mxu0 0.0
    %412 = vmatpush1.msra.mxu0 %v370
    %413 = vmatprep.subr.mxu0 0.0
    %414 = vmatpush1.msra.mxu0 %v371
    %415 = vmatprep.subr.mxu0 0.0
    %416 = vmatpush1.msra.mxu0 %v372
    %417 = vmatprep.subr.mxu0 0.0
    %418 = vmatpush1.msra.mxu0 %v373
    %419 = vmatprep.subr.mxu0 0.0
    %420 = vmatpush1.msra.mxu0 %v374
    %421 = vmatprep.subr.mxu0 0.0
    %422 = vmatpush1.msra.mxu0 %v375
    %423 = vmatprep.subr.mxu0 0.0
    %424 = vmatpush1.msra.mxu0 %v376
    %425 = vmatprep.subr.mxu0 0.0
    %426 = vmatpush1.msra.mxu0 %v377
    %427 = vmatprep.subr.mxu0 0.0
    %428 = vmatpush1.msra.mxu0 %v378
    %429 = vmatprep.subr.mxu0 0.0
    %430 = vmatpush1.msra.mxu0 %v379
    %431 = vmatprep.subr.mxu0 0.0
    %432 = vmatpush1.msra.mxu0 %v380
    %433 = vmatprep.subr.mxu0 0.0
    %434 = vmatpush1.msra.mxu0 %v381
    %435 = vmatprep.subr.mxu0 0.0
    %436 = vmatpush1.msra.mxu0 %v382
    %437 = vmatprep.subr.mxu0 0.0
    %438 = vmatpush1.msra.mxu0 %v383
    %439 = vmatprep.subr.mxu0 0.0
    %440 = vmatpush1.msra.mxu0 %v384
    %441 = vmatprep.subr.mxu0 0.0
    %442 = vmatpush1.msra.mxu0 %v385
    %443 = vmatprep.subr.mxu0 0.0
    %444 = vmatpush1.msra.mxu0 %v386
    %445 = vmatprep.subr.mxu0 0.0
    %446 = vmatpush1.msra.mxu0 %v387
    %447 = vmatprep.subr.mxu0 0.0
    %448 = vmatpush1.msra.mxu0 %v388
    %449 = vmatprep.subr.mxu0 0.0
    %450 = vmatpush1.msra.mxu0 %v389
    %451 = vmatprep.subr.mxu0 0.0
    %452 = vmatpush1.msra.mxu0 %v390
    %453 = vmatprep.subr.mxu0 0.0
    %454 = vmatpush1.msra.mxu0 %v391
    %455 = vmatprep.subr.mxu0 0.0
    %456 = vmatpush1.msra.mxu0 %v392
    %457 = vmatprep.subr.mxu0 0.0
    %458 = vmatpush1.msra.mxu0 %v393
    %459 = vmatprep.subr.mxu0 0.0
    %460 = vmatpush1.msra.mxu0 %v394
    %461 = vmatprep.subr.mxu0 0.0
    %462 = vmatpush1.msra.mxu0 %v395
    %463 = vmatprep.subr.mxu0 0.0
    %464 = vmatpush1.msra.mxu0 %v396
    %465 = vmatprep.subr.mxu0 0.0
    %466 = vmatpush1.msra.mxu0 %v397
    %467 = vmatprep.subr.mxu0 0.0
    %468 = vmatpush1.msra.mxu0 %v398
    %469 = vmatprep.subr.mxu0 0.0
    %470 = vmatpush1.msra.mxu0 %v399
    %471 = vmatprep.mubr.f32.mxu0 %v353
    %472 = vmatmul.mubr.f32.gmra.mrb[0].mxu0 %v173
    %v473 = vpop.f32.mrb[0].mxu0
    %v474 = vadd.f32 %v405, %v473
    %v475 = vpop.f32.mrb[0].mxu0
    %476 = vdwg.mxu0
    %v477 = vmax.f32 %v474, 0.0
    %478 = vst [vmem:[#allocation11 + $0x4] sm:$0x3] %v477
    // Predicated region
    $region62: #{tpu_custom_call.1} parent=1 // pred_check
      _
    $region63: #{tpu_custom_call.1} parent=1 // pred_check_branch
      %480 = sbr.rel (0) target = $region65
    $region64: #{tpu_custom_call.1} parent=1 // pred_region
      %s482 = ssub.s32 96, 96
      %483 = vsyncadd [#allocation5], %s482
      %s485 = sshll.u32 [#allocation11], 4
      %s486 = int_to_ptr.vmem [resolvable:$true] %s485
      %488 = dma.vmem_to_hbm [thread:$0]  %s486, 96, %s11, [#allocation5]
    $region65: #{tpu_custom_call.1} parent=1 // pred_fallthru
      _
    // Predicated region
    $region66: #{tpu_custom_call.1} parent=1 // pred_check
      _
    $region67: #{tpu_custom_call.1} parent=1 // pred_check_branch
      %490 = sbr.rel (0) target = $region69
    $region68: #{tpu_custom_call.1} parent=1 // pred_region
      %491 = dma.done [#allocation5], 96
    $region69: #{tpu_custom_call.1} parent=1 // pred_fallthru
      _
    %492 = vsyncpa [#allocation4], 1
    %493 = vsyncpa [#allocation7], 1
    %494 = vsyncpa [#allocation10], 1
    %495 = vsyncpa [#allocation5], 1

</llo_original>
